<compile_context>
chip_gen: v5e
topology: v5e:2x2
jax: 0.10.0
libtpu: 0.0.40
codegen_flags: <defaults>
</compile_context>

<pallas_src>
import functools

import jax
import jax.numpy as jnp
from jax.experimental import pallas as pl
from jax.experimental.pallas import tpu as pltpu

_LANE = 128
_SUBLANE = 8


def _round_up(n, m):
    return ((n + m - 1) // m) * m


def _vmem_budget_bytes():
    # Derive a per-call VMEM budget from the device; conservative fallback.
    try:
        phys = int(pltpu.get_tpu_info().vmem_capacity_bytes)
    except Exception:  # pragma: no cover - e.g. interpret mode / old jax
        phys = 64 << 20  # v7x physical size (the smallest of the three gens)
    return max(16 << 20, min(phys // 2, 64 << 20))


def _patch_embed_kernel(x_ref, w_ref, b_ref, o_ref):
    # x_ref: (tm, K)  rows of flattened patches      (compute dtype)
    # w_ref: (K, tn)  projection weight (column tile) (compute dtype)
    # b_ref: (1, tn)  bias                            (f32)
    # o_ref: (tm, tn) output tile                     (final dtype)
    acc = jnp.dot(x_ref[...], w_ref[...], preferred_element_type=jnp.float32)
    o_ref[...] = (acc + b_ref[...]).astype(o_ref.dtype)


@functools.partial(jax.jit, static_argnames=("patch_size", "compute_dtype"))
def patch_embedding(x, weight, bias, patch_size, compute_dtype=jnp.bfloat16):
    """
    x:      (B, C, H, W)  (NCHW, same as torch)
    weight: (E, C, P, P)  (torch Conv2d weight layout)
    bias:   (E,)
    returns (B, n_patches, E) with n_patches = (H//P) * (W//P), dtype = x.dtype
    """
    B, C, H, W = x.shape
    E = weight.shape[0]
    P = patch_size
    hp, wp = H // P, W // P
    n_patches = hp * wp
    K = C * P * P
    M = B * n_patches

    out_dtype = x.dtype
    itemsize = jnp.dtype(compute_dtype).itemsize
    out_itemsize = jnp.dtype(out_dtype).itemsize
    budget = _vmem_budget_bytes()

    # ---- glue: NCHW image -> (M, K) matrix of flattened patches ------------
    # The dtype cast is fused into this transpose by XLA (single HBM pass).
    # TODO(synk): fold the NCHW patch gather into the kernel (or accept NHWC)
    # to avoid materializing the (M, K) intermediate in HBM entirely.
    patches = x.reshape(B, C, hp, P, wp, P)
    patches = (
        jnp.transpose(patches, (0, 2, 4, 1, 3, 5)).reshape(M, K).astype(compute_dtype)
    )

    # Conv2d weight (E, C, P, P) -> (K, E) so patches @ w_mat == conv output.
    w_mat = jnp.transpose(weight.reshape(E, K)).astype(compute_dtype)
    b_row = bias.astype(jnp.float32).reshape(1, E)

    # ---- column (E) tiling: hold the whole weight resident when it fits ----
    if 2 * K * E * itemsize <= budget // 2:
        tn, Ep = E, E                      # weight DMA'd once, no E padding
    else:
        tn = 512
        while tn > _LANE and 2 * K * tn * itemsize > budget // 2:
            tn //= 2
        Ep = _round_up(E, tn)              # pad -> no column truncation
    if Ep > E:
        w_mat = jnp.pad(w_mat, ((0, 0), (0, Ep - E)))
        b_row = jnp.pad(b_row, ((0, 0), (0, Ep - E)))

    # ---- row (M) tiling: biggest tile that fits the VMEM budget -------------
    # TODO(synk): for very large K (e.g. patch_size >= 32) add a K grid axis
    # marked "arbitrary" with an f32 accumulator instead of shrinking tm.
    def working_set(tm_):
        return (2 * tm_ * K * itemsize        # x tiles (double buffered)
                + 2 * K * tn * itemsize       # weight
                + 2 * tn * 4                  # bias
                + 2 * tm_ * tn * out_itemsize)  # output tiles

    tm = min(512, M)
    while tm > _SUBLANE and working_set(tm) > (budget * 3) // 4:
        tm = max(_SUBLANE, _round_up(tm // 2, _SUBLANE))

    grid = (pl.cdiv(M, tm), Ep // tn)

    cost = pl.CostEstimate(
        flops=2 * M * K * Ep,
        transcendentals=0,
        bytes_accessed=(M * K + K * Ep) * itemsize + M * Ep * out_itemsize + Ep * 4,
    )

    out = pl.pallas_call(
        _patch_embed_kernel,
        out_shape=jax.ShapeDtypeStruct((M, Ep), out_dtype),
        grid_spec=pltpu.PrefetchScalarGridSpec(
            num_scalar_prefetch=0,
            grid=grid,
            in_specs=[
                pl.BlockSpec((tm, K), lambda i, j: (i, 0)),   # patch rows
                pl.BlockSpec((K, tn), lambda i, j: (0, j)),   # weight (resident if 1 col tile)
                pl.BlockSpec((1, tn), lambda i, j: (0, j)),   # bias
            ],
            out_specs=pl.BlockSpec((tm, tn), lambda i, j: (i, j)),
        ),
        compiler_params=pltpu.CompilerParams(
            dimension_semantics=("parallel", "parallel"),
            vmem_limit_bytes=int(budget),
        ),
        cost_estimate=cost,
    )(patches, w_mat, b_row)

    if Ep > E:
        out = out[:, :E]
    return out.reshape(B, n_patches, E)


if __name__ == "__main__":
    # Small shapes consistent with the module's forward:
    # img_size=16, patch_size=4, in_channels=4, embed_dim=32, batch=2
    B, C, H, W = 2, 4, 16, 16
    P = 4
    E = 32
    n_patches = (H // P) * (W // P)  # 16

    key = jax.random.PRNGKey(0)
    kx, kw, kb = jax.random.split(key, 3)
    x = jax.random.normal(kx, (B, C, H, W), dtype=jnp.float32)
    weight = jax.random.normal(kw, (E, C, P, P), dtype=jnp.float32) * 0.02
    bias = jax.random.normal(kb, (E,), dtype=jnp.float32) * 0.02

    # Reference (same semantics as torch Conv2d NCHW + flatten + transpose).
    ref = jax.lax.conv_general_dilated(
        x, weight, window_strides=(P, P), padding="VALID",
        dimension_numbers=("NCHW", "OIHW", "NCHW"),
    ) + bias.reshape(1, E, 1, 1)
    ref = ref.reshape(B, E, n_patches).transpose(0, 2, 1)

    # Default fast path: bf16 MXU operands, f32 accumulation.
    out = jax.block_until_ready(patch_embedding(x, weight, bias, patch_size=P))
    assert out.shape == (B, n_patches, E), out.shape
    assert out.dtype == x.dtype, out.dtype
    assert jnp.allclose(out, ref, atol=2e-2, rtol=2e-2), float(
        jnp.max(jnp.abs(out - ref))
    )

    # Exact path: f32 operands, tight tolerance against the conv reference.
    out_f32 = jax.block_until_ready(
        patch_embedding(x, weight, bias, patch_size=P, compute_dtype=jnp.float32)
    )
    assert jnp.allclose(out_f32, ref, atol=1e-4, rtol=1e-4), float(
        jnp.max(jnp.abs(out_f32 - ref))
    )

    print("KERNEL_OK")
</pallas_src>

<mosaic_0001>
module attributes {stable_mosaic.version = 11 : i64} {
  func.func @_patch_embed_kernel(%arg0: i32, %arg1: i32, %arg2: memref<32x64xbf16, #tpu.memory_space<vmem>>, %arg3: memref<64x32xbf16, #tpu.memory_space<vmem>>, %arg4: memref<1x32xf32, #tpu.memory_space<vmem>>, %arg5: memref<32x32xf32, #tpu.memory_space<vmem>>) attributes {dimension_semantics = [#tpu.dimension_semantics<parallel>, #tpu.dimension_semantics<parallel>], iteration_bounds = array<i64: 1, 1>, scalar_prefetch = 0 : i64, scratch_operands = 0 : i64, tpu.core_type = #tpu.core_type<tc>, window_params = [{transform_indices = @transform_0, window_bounds = array<i64: 32, 64>}, {transform_indices = @transform_1, window_bounds = array<i64: 64, 32>}, {transform_indices = @transform_2, window_bounds = array<i64: 1, 32>}, {transform_indices = @transform_3, window_bounds = array<i64: 32, 32>}]} {
    %c0 = arith.constant 0 : index
    %c0_0 = arith.constant 0 : index
    %0 = vector.load %arg2[%c0, %c0_0] : memref<32x64xbf16, #tpu.memory_space<vmem>>, vector<32x64xbf16>
    %c0_1 = arith.constant 0 : index
    %c0_2 = arith.constant 0 : index
    %1 = vector.load %arg3[%c0_1, %c0_2] : memref<64x32xbf16, #tpu.memory_space<vmem>>, vector<64x32xbf16>
    %cst = arith.constant dense<0.000000e+00> : vector<32x32xf32>
    %2 = tpu.matmul %0, %1, %cst {dimension_numbers = #tpu.dot_dimension_numbers<[1], [0], [0], [1], [0, 0, 1, 1], [], []>} : vector<32x64xbf16>, vector<64x32xbf16>, vector<32x32xf32> -> vector<32x32xf32>
    %c0_3 = arith.constant 0 : index
    %c0_4 = arith.constant 0 : index
    %3 = vector.load %arg4[%c0_3, %c0_4] : memref<1x32xf32, #tpu.memory_space<vmem>>, vector<1x32xf32>
    %4 = vector.broadcast %3 : vector<1x32xf32> to vector<32x32xf32>
    %5 = arith.addf %2, %4 : vector<32x32xf32>
    %c0_5 = arith.constant 0 : index
    %c0_6 = arith.constant 0 : index
    %6 = vector.load %arg5[%c0_5, %c0_6] : memref<32x32xf32, #tpu.memory_space<vmem>>, vector<32x32xf32>
    tpu.vector_store %arg5[%c0_5, %c0_6], %5 {strides = array<i32>} : memref<32x32xf32, #tpu.memory_space<vmem>>, vector<32x32xf32>,
    return
  }
  func.func @transform_0(%arg0: i32, %arg1: i32) -> (i32, i32) {
    %c0_i32 = arith.constant 0 : i32
    %c0_i32_0 = arith.constant 0 : i32
    return %arg0, %c0_i32 : i32, i32
  }
  func.func @transform_1(%arg0: i32, %arg1: i32) -> (i32, i32) {
    %c0_i32 = arith.constant 0 : i32
    %c0_i32_0 = arith.constant 0 : i32
    return %c0_i32, %arg1 : i32, i32
  }
  func.func @transform_2(%arg0: i32, %arg1: i32) -> (i32, i32) {
    %c0_i32 = arith.constant 0 : i32
    %c0_i32_0 = arith.constant 0 : i32
    return %c0_i32, %arg1 : i32, i32
  }
  func.func @transform_3(%arg0: i32, %arg1: i32) -> (i32, i32) {
    %c0_i32 = arith.constant 0 : i32
    return %arg0, %arg1 : i32, i32
  }
}

</mosaic_0001>

<llo_original>
// kernel: patch_embedding.1
$region0: #{patch_embedding.1}
  #allocation0 [shape = 'u32[]', space=smem, size = 0x4, offset = 0x4, fixed_abs, tag = 'smem constant byte address 0x4 - core index']
  #allocation1 [shape = 'u32[72,128]{1,0:T(1,128)}', space=vmem, size = 0x9000, scoped, tag = 'internal scratch']
  %s0 = inlined_call_operand.vmem [shape: bf16[32,64], index: 0, kind: input, shape index: {}]
  %s1 = inlined_call_operand.vmem [shape: bf16[64,32], index: 1, kind: input, shape index: {}]
  %s2 = inlined_call_operand.vmem [shape: f32[1,32], index: 2, kind: input, shape index: {}]
  %s3 = inlined_call_operand.hbm [shape: f32[32,32], index: 3, kind: output, shape index: {}]
  %s4 = sld [smem:[#allocation0]]
  $region22: #{patch_embedding.1} parent=0
    _
  %s6 = ssub.s32 1, %s4
  %s7 = scalar_select 0, %s6, %s4
  $region1: #{patch_embedding.1} parent=0
    #allocation2 [shape = 'u8[16384]{0}', space=vmem, size = 0x4000, scoped, tag = 'output window, operand 0, single buffered']
    #allocation3 [shape = 's32[1]{0}', space=sflag, size = 0x4, scoped, tag = 'scoped memory for patch_embedding.1']
    %8 = vsyncpa [#allocation3], 0
    // Predicated region
    $region2: #{patch_embedding.1} parent=1 // pred_check
      _
    $region3: #{patch_embedding.1} parent=1 // pred_check_branch
      %10 = sbr.rel (0) target = $region5
    $region4: #{patch_embedding.1} parent=1 // pred_region
      _
    $region5: #{patch_embedding.1} parent=1 // pred_fallthru
      _
    // Predicated region
    $region6: #{patch_embedding.1} parent=1 // pred_check
      _
    $region7: #{patch_embedding.1} parent=1 // pred_check_branch
      %12 = sbr.rel (0) target = $region9
    $region8: #{patch_embedding.1} parent=1 // pred_region
      _
    $region9: #{patch_embedding.1} parent=1 // pred_fallthru
      _
    // Predicated region
    $region10: #{patch_embedding.1} parent=1 // pred_check
      _
    $region11: #{patch_embedding.1} parent=1 // pred_check_branch
      %14 = sbr.rel (0) target = $region13
    $region12: #{patch_embedding.1} parent=1 // pred_region
      _
    $region13: #{patch_embedding.1} parent=1 // pred_fallthru
      _
    %v16 = vld [vmem:[%s0] sm:$0xf]
    %v17 = vld [vmem:[%s0 + $0x4] sm:$0xf]
    %v18 = vld [vmem:[%s0 + $0x8] sm:$0xf]
    %v19 = vld [vmem:[%s0 + $0xc] sm:$0xf]
    %v20 = vld [vmem:[%s1] sm:$0xf]
    %v21 = vld [vmem:[%s1 + $0x4] sm:$0xf]
    %v22 = vld [vmem:[%s1 + $0x8] sm:$0xf]
    %v23 = vld [vmem:[%s1 + $0xc] sm:$0xf]
    %v24 = vld [vmem:[%s1 + $0x10] sm:$0xf]
    %v25 = vld [vmem:[%s1 + $0x14] sm:$0xf]
    %v26 = vld [vmem:[%s1 + $0x18] sm:$0xf]
    %v27 = vld [vmem:[%s1 + $0x1c] sm:$0xf]
    %v28 = vld [vmem:[%s2] sm:$0x1]
    %v30 = vperm.slane %v28, 0
    %v36 = vunpack.c.l.b16 %v16
    %v37 = vunpack.c.l.b16 %v17
    %v38 = vunpack.c.l.b16 %v18
    %v39 = vunpack.c.l.b16 %v19
    %v40 = vpack.c.b16 %v37, %v36
    %v41 = vpack.c.b16 %v39, %v38
    %v50 = vunpack.c.l.b16 %v20
    %v51 = vunpack.c.l.b16 %v21
    %v52 = vunpack.c.l.b16 %v22
    %v53 = vunpack.c.l.b16 %v23
    %v54 = vunpack.c.l.b16 %v24
    %v55 = vunpack.c.l.b16 %v25
    %v56 = vunpack.c.l.b16 %v26
    %v57 = vunpack.c.l.b16 %v27
    %v58 = vpack.c.b16 %v51, %v50
    %v59 = vpack.c.b16 %v53, %v52
    %v60 = vpack.c.b16 %v55, %v54
    %v61 = vpack.c.b16 %v57, %v56
    %vm66 = vcmask 523264
    %v68 = vsel %vm66, %v40, 0
    %v71 = vsel %vm66, %v41, 0
    %73 = vmatpush.bf16.msra.mxu0 0
    %74 = vmatpush.bf16.msra.mxu0 0
    %75 = vmatpush.bf16.msra.mxu0 0
    %76 = vmatpush.bf16.msra.mxu0 0
    %77 = vmatpush.bf16.msra.mxu0 %v61
    %78 = vmatpush.bf16.msra.mxu0 %v60
    %79 = vmatpush.bf16.msra.mxu0 %v59
    %80 = vmatpush.bf16.msra.mxu0 %v58
    %81 = vmatmul.bf16.gmra.mxu0 %v68
    %v82 = vpop.f32.mrf.mxu0
    %v83 = vadd.f32 %v30, %v82
    %v84 = vpop.f32.mrf.mxu0
    %v85 = vadd.f32 %v30, %v84
    %86 = vmatmul.bf16.gmra.mxu0 %v71
    %v87 = vpop.f32.mrf.mxu0
    %v88 = vadd.f32 %v30, %v87
    %v89 = vpop.f32.mrf.mxu0
    %v90 = vadd.f32 %v30, %v89
    %91 = vdwg.mxu0
    %vm92 = vcmask 261120
    %93 = vst.msk [vmem:[#allocation2] sm:$0xff] %vm92, %v83
    %94 = vst.msk [vmem:[#allocation2 + $0x8] sm:$0xff] %vm92, %v85
    %95 = vst.msk [vmem:[#allocation2 + $0x10] sm:$0xff] %vm92, %v88
    %96 = vst.msk [vmem:[#allocation2 + $0x18] sm:$0xff] %vm92, %v90
    // Predicated region
    $region14: #{patch_embedding.1} parent=1 // pred_check
      _
    $region15: #{patch_embedding.1} parent=1 // pred_check_branch
      %98 = sbr.rel (0) target = $region17
    $region16: #{patch_embedding.1} parent=1 // pred_region
      %100 = vsyncadd [#allocation3], 0
      %s101 = sshll.u32 [#allocation2], 4
      %s102 = int_to_ptr.vmem [resolvable:$true] %s101
      %s103 = sshll.u32 %s3, 4
      %s104 = int_to_ptr.hbm [resolvable:$true] %s103
      %109 = dma.vmem_to_hbm [thread:$0]  %s102, 512, %s104, [#allocation3], 128, 128, 8
    $region17: #{patch_embedding.1} parent=1 // pred_fallthru
      _
    // Predicated region
    $region18: #{patch_embedding.1} parent=1 // pred_check
      _
    $region19: #{patch_embedding.1} parent=1 // pred_check_branch
      %111 = sbr.rel (0) target = $region21
    $region20: #{patch_embedding.1} parent=1 // pred_region
      %113 = dma.done [#allocation3], 512
    $region21: #{patch_embedding.1} parent=1 // pred_fallthru
      _
    %114 = vsyncpa [#allocation3], 1

</llo_original>
